<compile_context>
chip_gen: v6e
topology: v6e:2x2x1
jax: 0.10.0
libtpu: 0.0.40
codegen_flags: <defaults>
</compile_context>

<pallas_src>
import jax
import jax.numpy as jnp
from jax import lax
from jax.experimental import pallas as pl
from jax.experimental.pallas import tpu as pltpu

EPS = 1e-5
_LANE = 128
_X_RESIDENT_BUDGET = 24 * 1024 * 1024   # double-buffered x block budget (bytes)
_VMEM_BUDGET = 40 * 1024 * 1024         # total tile footprint budget (bytes)


def _round_up(x, m):
    return ((x + m - 1) // m) * m


def _choose_out_tiling(out_f, requested):
    """Return (out_f_pad, tile_out) with out_f_pad % tile_out == 0."""
    if out_f % _LANE != 0 and out_f <= 2 * _LANE:
        # Tiny / unaligned layer: single full-dim block, no padding, no slice.
        return out_f, out_f
    out_f_pad = _round_up(out_f, _LANE)
    req = min(max(_LANE, (requested // _LANE) * _LANE), out_f_pad)
    if out_f_pad % req == 0:
        return out_f_pad, req
    # Prefer padding a few extra features over collapsing the tile to 128
    # (a 128-wide tile multiplies J -> more x re-reads + grid-step overhead).
    padded = _round_up(out_f_pad, req)
    if padded - out_f_pad <= max(out_f_pad // 4, _LANE):
        return padded, req
    t = req
    while t > _LANE and out_f_pad % t != 0:
        t -= _LANE
    return out_f_pad, t


def _footprint_bytes(n, tile_k, tile_out):
    x_blk = n * tile_k * 4            # activations stay f32 in HBM/VMEM
    w_blk = tile_k * tile_out * 2     # weights pre-cast to bf16
    o_blk = n * tile_out * 4
    prm = 2 * tile_out * 4
    return 2 * (x_blk + w_blk + o_blk + prm) + n * tile_out * 4  # +acc scratch


def _block_kernel(x_ref, w_ref, g_ref, beta_ref, o_ref, acc_ref):
    k = pl.program_id(1)

    # Partial matmul for this K slab on the MXU: (N, tk)bf16 x (tk, to)bf16
    # accumulated in f32.
    partial = jnp.dot(
        x_ref[...].astype(jnp.bfloat16),
        w_ref[...],
        preferred_element_type=jnp.float32,
    )

    @pl.when(k == 0)
    def _():
        acc_ref[...] = partial            # direct store: no zero-fill sweep

    @pl.when(k > 0)
    def _():
        acc_ref[...] += partial

    @pl.when(k == pl.num_programs(1) - 1)
    def _():
        # BatchNorm1d (training mode), per-feature stats over the full batch.
        # The Linear bias is omitted: (y - mean(y)) is invariant to adding a
        # per-feature constant and the variance is unchanged, so the output is
        # identical to Linear(+bias) followed by BatchNorm.
        y = acc_ref[...]
        inv_n = 1.0 / y.shape[0]
        s = jnp.sum(y, axis=0, keepdims=True)
        ss = jnp.sum(y * y, axis=0, keepdims=True)
        mean = s * inv_n
        var = jnp.maximum(ss * inv_n - mean * mean, 0.0)   # biased variance
        inv_std = lax.rsqrt(var + EPS)
        # Padded (zero) output features get var=0 -> inv_std ~ 1/sqrt(eps), but
        # gamma_pad = beta_pad = 0 so the padded columns come out exactly 0 and
        # are sliced off by the wrapper (no NaN/garbage leakage).
        scale = g_ref[...] * inv_std
        shift = beta_ref[...] - mean * scale
        o_ref[...] = (y * scale + shift).astype(o_ref.dtype)


def nn_block_with_normalization(x, weight, bias, gamma, beta,
                                *, tile_out=256, tile_k=512):
    """x: (N, in_features); weight: (out_features, in_features) like PyTorch."""
    # Training-mode BatchNorm cancels the Linear bias exactly (see kernel note).
    del bias

    n, in_f = x.shape
    out_f = weight.shape[0]

    # ---- K (contraction) axis: prefer a fully-resident x (fetched once) ----
    if in_f <= tile_k or 2 * n * in_f * 4 <= _X_RESIDENT_BUDGET:
        tile_k_eff, in_f_pad = in_f, in_f     # full-dim K block: no pad, 1 K step
    else:
        tile_k_eff = max(_LANE, (tile_k // _LANE) * _LANE)
        in_f_pad = _round_up(in_f, tile_k_eff)

    # ---- out-feature axis: lane-dense tiles ----
    out_f_pad, tile_out_eff = _choose_out_tiling(out_f, tile_out)

    # ---- shrink tiles if the footprint exceeds the conservative VMEM budget ----
    for cand in (tile_out, 384, 256, 128):
        if _footprint_bytes(n, tile_k_eff, tile_out_eff) <= _VMEM_BUDGET:
            break
        if cand >= tile_out_eff:
            continue
        out_f_pad, tile_out_eff = _choose_out_tiling(out_f, cand)
    while (_footprint_bytes(n, tile_k_eff, tile_out_eff) > _VMEM_BUDGET
           and tile_k_eff < in_f and tile_k_eff > _LANE):
        tile_k_eff -= _LANE
        in_f_pad = _round_up(in_f, tile_k_eff)

    # ---- prepare operands (wrapper work is on the small weight/params only,
    #      unless K genuinely needs tiling) ----
    xp = x if in_f_pad == in_f else jnp.pad(x, ((0, 0), (0, in_f_pad - in_f)))
    # One-time transpose + bf16 cast + pad of the weight -> natural (K, N) MXU
    # layout, no per-step transpose inside the kernel.
    wp = jnp.pad(weight.T.astype(jnp.bfloat16),
                 ((0, in_f_pad - in_f), (0, out_f_pad - out_f)))
    pad_o = out_f_pad - out_f
    gp = jnp.pad(gamma, (0, pad_o)).reshape(1, out_f_pad).astype(jnp.float32)
    bep = jnp.pad(beta, (0, pad_o)).reshape(1, out_f_pad).astype(jnp.float32)

    grid = (out_f_pad // tile_out_eff, in_f_pad // tile_k_eff)

    fp = _footprint_bytes(n, tile_k_eff, tile_out_eff)
    vmem_limit = max(min(int(fp * 1.3) + (2 << 20), 56 << 20), 16 << 20)

    cost = pl.CostEstimate(
        flops=2 * n * out_f_pad * in_f_pad,
        transcendentals=0,
        bytes_accessed=(n * in_f_pad * 4        # x (read once when resident)
                        + in_f_pad * out_f_pad * 2   # bf16 weight
                        + n * out_f_pad * 4),        # f32 output
    )

    out = pl.pallas_call(
        _block_kernel,
        out_shape=jax.ShapeDtypeStruct((n, out_f_pad), jnp.float32),
        grid_spec=pltpu.PrefetchScalarGridSpec(
            num_scalar_prefetch=0,
            grid=grid,
            in_specs=[
                pl.BlockSpec((n, tile_k_eff), lambda j, k: (0, k)),             # x (f32)
                pl.BlockSpec((tile_k_eff, tile_out_eff), lambda j, k: (k, j)),  # W^T (bf16)
                pl.BlockSpec((1, tile_out_eff), lambda j, k: (0, j)),           # gamma
                pl.BlockSpec((1, tile_out_eff), lambda j, k: (0, j)),           # beta
            ],
            out_specs=pl.BlockSpec((n, tile_out_eff), lambda j, k: (0, j)),
            scratch_shapes=[pltpu.VMEM((n, tile_out_eff), jnp.float32)],
        ),
        compiler_params=pltpu.CompilerParams(
            # out-feature tiles are independent -> shard across cores;
            # K is the accumulation axis -> arbitrary (and last).
            dimension_semantics=("parallel", "arbitrary"),
            vmem_limit_bytes=vmem_limit,
        ),
        cost_estimate=cost,
    )(xp, wp, gp, bep)

    if out_f_pad != out_f:
        out = out[:, :out_f]
    return out


def _reference(x, weight, bias, gamma, beta, *, matmul_dtype=jnp.float32):
    y = jnp.dot(x.astype(matmul_dtype), weight.T.astype(matmul_dtype),
                preferred_element_type=jnp.float32) + bias
    mean = jnp.mean(y, axis=0, keepdims=True)
    var = jnp.mean((y - mean) ** 2, axis=0, keepdims=True)
    return gamma * (y - mean) / jnp.sqrt(var + EPS) + beta


if __name__ == "__main__":
    # Small shapes consistent with the module: batch=8, in=32, out=32
    N, IN_F, OUT_F = 8, 32, 32

    key = jax.random.PRNGKey(0)
    kx, kw, kb, kg, kbe = jax.random.split(key, 5)

    x = jax.random.normal(kx, (N, IN_F), dtype=jnp.float32)

    # Deterministic parameter init (PyTorch-like scales):
    #   Linear: uniform(-1/sqrt(in), 1/sqrt(in)); BatchNorm: gamma~1, beta~0
    bound = 1.0 / jnp.sqrt(jnp.float32(IN_F))
    weight = jax.random.uniform(kw, (OUT_F, IN_F), minval=-bound, maxval=bound,
                                dtype=jnp.float32)
    bias = jax.random.uniform(kb, (OUT_F,), minval=-bound, maxval=bound,
                              dtype=jnp.float32)
    gamma = jnp.ones((OUT_F,), jnp.float32) + 0.01 * jax.random.normal(
        kg, (OUT_F,), dtype=jnp.float32)
    beta = 0.01 * jax.random.normal(kbe, (OUT_F,), dtype=jnp.float32)

    out = jax.block_until_ready(
        nn_block_with_normalization(x, weight, bias, gamma, beta))

    assert out.shape == (N, OUT_F)

    # Matched-precision reference (bf16 matmul, f32 accumulation) -> tight check.
    ref_bf16 = _reference(x, weight, bias, gamma, beta,
                          matmul_dtype=jnp.bfloat16)
    assert jnp.allclose(out, ref_bf16, atol=1e-4, rtol=1e-4), \
        "mismatch vs matched-precision reference"

    # Full-f32 module reference -> looser tolerance (bf16 MXU rounding only).
    ref_f32 = _reference(x, weight, bias, gamma, beta,
                         matmul_dtype=jnp.float32)
    assert jnp.allclose(out, ref_f32, atol=3e-2, rtol=3e-2), \
        "mismatch vs f32 reference"

    print("KERNEL_OK")
</pallas_src>

<mosaic_0001>
module attributes {stable_mosaic.version = 11 : i64} {
  func.func @_block_kernel(%arg0: i32, %arg1: i32, %arg2: memref<8x32xf32, #tpu.memory_space<vmem>>, %arg3: memref<32x32xbf16, #tpu.memory_space<vmem>>, %arg4: memref<1x32xf32, #tpu.memory_space<vmem>>, %arg5: memref<1x32xf32, #tpu.memory_space<vmem>>, %arg6: memref<8x32xf32, #tpu.memory_space<vmem>>, %arg7: memref<8x32xf32, #tpu.memory_space<vmem>>) attributes {dimension_semantics = [#tpu.dimension_semantics<parallel>, #tpu.dimension_semantics<arbitrary>], iteration_bounds = array<i64: 1, 1>, scalar_prefetch = 0 : i64, scratch_operands = 1 : i64, tpu.core_type = #tpu.core_type<tc>, window_params = [{transform_indices = @transform_0, window_bounds = array<i64: 8, 32>}, {transform_indices = @transform_1, window_bounds = array<i64: 32, 32>}, {transform_indices = @transform_2, window_bounds = array<i64: 1, 32>}, {transform_indices = @transform_3, window_bounds = array<i64: 1, 32>}, {transform_indices = @transform_4, window_bounds = array<i64: 8, 32>}]} {
    %c0 = arith.constant 0 : index
    %c0_0 = arith.constant 0 : index
    %0 = vector.load %arg2[%c0, %c0_0] : memref<8x32xf32, #tpu.memory_space<vmem>>, vector<8x32xf32>
    %1 = arith.truncf %0 : vector<8x32xf32> to vector<8x32xbf16>
    %c0_1 = arith.constant 0 : index
    %c0_2 = arith.constant 0 : index
    %2 = vector.load %arg3[%c0_1, %c0_2] : memref<32x32xbf16, #tpu.memory_space<vmem>>, vector<32x32xbf16>
    %cst = arith.constant dense<0.000000e+00> : vector<8x32xf32>
    %3 = tpu.matmul %1, %2, %cst {dimension_numbers = #tpu.dot_dimension_numbers<[1], [0], [0], [1], [0, 0, 1, 1], [], []>} : vector<8x32xbf16>, vector<32x32xbf16>, vector<8x32xf32> -> vector<8x32xf32>
    %c0_i32 = arith.constant 0 : i32
    %4 = arith.cmpi eq, %arg1, %c0_i32 : i32
    %5 = arith.extui %4 : i1 to i32
    %c0_i32_3 = arith.constant 0 : i32
    %6 = arith.cmpi ne, %5, %c0_i32_3 : i32
    scf.if %6 {
      %c0_8 = arith.constant 0 : index
      %c0_9 = arith.constant 0 : index
      %13 = vector.load %arg7[%c0_8, %c0_9] : memref<8x32xf32, #tpu.memory_space<vmem>>, vector<8x32xf32>
      tpu.vector_store %arg7[%c0_8, %c0_9], %3 {strides = array<i32>} : memref<8x32xf32, #tpu.memory_space<vmem>>, vector<8x32xf32>,
    } else {
    }
    %c0_i32_4 = arith.constant 0 : i32
    %7 = arith.cmpi sgt, %arg1, %c0_i32_4 : i32
    %8 = arith.extui %7 : i1 to i32
    %c0_i32_5 = arith.constant 0 : i32
    %9 = arith.cmpi ne, %8, %c0_i32_5 : i32
    scf.if %9 {
      %c0_8 = arith.constant 0 : index
      %c0_9 = arith.constant 0 : index
      %13 = vector.load %arg7[%c0_8, %c0_9] : memref<8x32xf32, #tpu.memory_space<vmem>>, vector<8x32xf32>
      %14 = arith.addf %13, %3 : vector<8x32xf32>
      %c0_10 = arith.constant 0 : index
      %c0_11 = arith.constant 0 : index
      %15 = vector.load %arg7[%c0_10, %c0_11] : memref<8x32xf32, #tpu.memory_space<vmem>>, vector<8x32xf32>
      tpu.vector_store %arg7[%c0_10, %c0_11], %14 {strides = array<i32>} : memref<8x32xf32, #tpu.memory_space<vmem>>, vector<8x32xf32>,
    } else {
    }
    %c0_i32_6 = arith.constant 0 : i32
    %10 = arith.cmpi eq, %arg1, %c0_i32_6 : i32
    %11 = arith.extui %10 : i1 to i32
    %c0_i32_7 = arith.constant 0 : i32
    %12 = arith.cmpi ne, %11, %c0_i32_7 : i32
    scf.if %12 {
      %c0_8 = arith.constant 0 : index
      %c0_9 = arith.constant 0 : index
      %13 = vector.load %arg7[%c0_8, %c0_9] : memref<8x32xf32, #tpu.memory_space<vmem>>, vector<8x32xf32>
      %cst_10 = arith.constant dense<0.000000e+00> : vector<32xf32>
      %14 = vector.multi_reduction <add>, %13, %cst_10 [0] : vector<8x32xf32> to vector<32xf32>
      %15 = vector.shape_cast %14 : vector<32xf32> to vector<1x32xf32>
      %16 = arith.mulf %13, %13 : vector<8x32xf32>
      %cst_11 = arith.constant dense<0.000000e+00> : vector<32xf32>
      %17 = vector.multi_reduction <add>, %16, %cst_11 [0] : vector<8x32xf32> to vector<32xf32>
      %18 = vector.shape_cast %17 : vector<32xf32> to vector<1x32xf32>
      %cst_12 = arith.constant 1.250000e-01 : f32
      %19 = vector.broadcast %cst_12 : f32 to vector<1x32xf32>
      %20 = arith.mulf %15, %19 : vector<1x32xf32>
      %cst_13 = arith.constant 1.250000e-01 : f32
      %21 = vector.broadcast %cst_13 : f32 to vector<1x32xf32>
      %22 = arith.mulf %18, %21 : vector<1x32xf32>
      %23 = arith.mulf %20, %20 : vector<1x32xf32>
      %24 = arith.subf %22, %23 : vector<1x32xf32>
      %cst_14 = arith.constant 0.000000e+00 : f32
      %25 = vector.broadcast %cst_14 : f32 to vector<1x32xf32>
      %26 = arith.maximumf %24, %25 : vector<1x32xf32>
      %cst_15 = arith.constant 9.99999974E-6 : f32
      %27 = vector.broadcast %cst_15 : f32 to vector<1x32xf32>
      %28 = arith.addf %26, %27 : vector<1x32xf32>
      %29 = math.rsqrt %28 : vector<1x32xf32>
      %c0_16 = arith.constant 0 : index
      %c0_17 = arith.constant 0 : index
      %30 = vector.load %arg4[%c0_16, %c0_17] : memref<1x32xf32, #tpu.memory_space<vmem>>, vector<1x32xf32>
      %31 = arith.mulf %30, %29 : vector<1x32xf32>
      %c0_18 = arith.constant 0 : index
      %c0_19 = arith.constant 0 : index
      %32 = vector.load %arg5[%c0_18, %c0_19] : memref<1x32xf32, #tpu.memory_space<vmem>>, vector<1x32xf32>
      %33 = arith.mulf %20, %31 : vector<1x32xf32>
      %34 = arith.subf %32, %33 : vector<1x32xf32>
      %35 = vector.broadcast %31 : vector<1x32xf32> to vector<8x32xf32>
      %36 = arith.mulf %13, %35 : vector<8x32xf32>
      %37 = vector.broadcast %34 : vector<1x32xf32> to vector<8x32xf32>
      %38 = arith.addf %36, %37 : vector<8x32xf32>
      %c0_20 = arith.constant 0 : index
      %c0_21 = arith.constant 0 : index
      %39 = vector.load %arg6[%c0_20, %c0_21] : memref<8x32xf32, #tpu.memory_space<vmem>>, vector<8x32xf32>
      tpu.vector_store %arg6[%c0_20, %c0_21], %38 {strides = array<i32>} : memref<8x32xf32, #tpu.memory_space<vmem>>, vector<8x32xf32>,
    } else {
    }
    return
  }
  func.func @transform_0(%arg0: i32, %arg1: i32) -> (i32, i32) {
    %c0_i32 = arith.constant 0 : i32
    %c0_i32_0 = arith.constant 0 : i32
    return %c0_i32, %arg1 : i32, i32
  }
  func.func @transform_1(%arg0: i32, %arg1: i32) -> (i32, i32) {
    %c0_i32 = arith.constant 0 : i32
    return %arg1, %arg0 : i32, i32
  }
  func.func @transform_2(%arg0: i32, %arg1: i32) -> (i32, i32) {
    %c0_i32 = arith.constant 0 : i32
    %c0_i32_0 = arith.constant 0 : i32
    return %c0_i32, %arg0 : i32, i32
  }
  func.func @transform_3(%arg0: i32, %arg1: i32) -> (i32, i32) {
    %c0_i32 = arith.constant 0 : i32
    %c0_i32_0 = arith.constant 0 : i32
    return %c0_i32, %arg0 : i32, i32
  }
  func.func @transform_4(%arg0: i32, %arg1: i32) -> (i32, i32) {
    %c0_i32 = arith.constant 0 : i32
    %c0_i32_0 = arith.constant 0 : i32
    return %c0_i32, %arg0 : i32, i32
  }
}

</mosaic_0001>

<llo_original>
// kernel: tpu_custom_call.1
$region0: #{tpu_custom_call.1}
  #allocation0 [shape = 'u32[]', space=smem, size = 0x4, offset = 0x4, fixed_abs, tag = 'smem constant byte address 0x4 - core index']
  #allocation1 [shape = 'u32[144,128]{1,0:T(1,128)}', space=vmem, size = 0x12000, scoped, tag = 'internal scratch']
  #allocation2 [shape = 'f32[8,32]{1,0:T(8,128)}', space=vmem, size = 0x1000, scoped, tag = 'scratch operand']
  %s0 = inlined_call_operand.hbm [shape: f32[8,32], index: 0, kind: input, shape index: {}]
  %s1 = inlined_call_operand.hbm [shape: bf16[32,32], index: 1, kind: input, shape index: {}]
  %s2 = inlined_call_operand.vmem [shape: f32[1,32], index: 2, kind: input, shape index: {}]
  %s3 = inlined_call_operand.vmem [shape: f32[1,32], index: 3, kind: input, shape index: {}]
  %s4 = inlined_call_operand.hbm [shape: f32[8,32], index: 4, kind: output, shape index: {}]
  %s5 = sld [smem:[#allocation0]]
  $region46: #{tpu_custom_call.1} parent=0
    _
  %s7 = ssub.s32 1, %s5
  %s8 = scalar_select 0, %s7, %s5
  $region1: #{tpu_custom_call.1} parent=0
    #allocation3 [shape = 'u8[4096]{0}', space=vmem, size = 0x1000, scoped, tag = 'input window, operand 0, single buffered']
    #allocation4 [shape = 's32[1]{0}', space=sflag, size = 0x4, scoped, tag = 'scoped memory for tpu_custom_call.1']
    #allocation5 [shape = 's32[1]{0}', space=sflag, size = 0x4, scoped, tag = 'scoped memory for tpu_custom_call.1']
    #allocation6 [shape = 'u8[8192]{0}', space=vmem, size = 0x2000, scoped, tag = 'input window, operand 1, single buffered']
    #allocation7 [shape = 's32[1]{0}', space=sflag, size = 0x4, scoped, tag = 'scoped memory for tpu_custom_call.1']
    #allocation8 [shape = 'u8[4096]{0}', space=vmem, size = 0x1000, scoped, tag = 'output window, operand 0, single buffered']
    %9 = vsyncpa [#allocation4], 0
    %10 = vsyncpa [#allocation7], 0
    %11 = vsyncpa [#allocation5], 0
    // Predicated region
    $region2: #{tpu_custom_call.1} parent=1 // pred_check
      _
    $region3: #{tpu_custom_call.1} parent=1 // pred_check_branch
      %13 = sbr.rel (0) target = $region5
    $region4: #{tpu_custom_call.1} parent=1 // pred_region
      %s15 = ssub.s32 128, 128
      %16 = vsyncadd [#allocation4], %s15
      %s18 = sshll.u32 [#allocation3], 4
      %s19 = int_to_ptr.vmem [resolvable:$true] %s18
      %21 = dma.hbm_to_vmem [thread:$0]  %s0, 128, %s19, [#allocation4]
    $region5: #{tpu_custom_call.1} parent=1 // pred_fallthru
      _
    // Predicated region
    $region6: #{tpu_custom_call.1} parent=1 // pred_check
      _
    $region7: #{tpu_custom_call.1} parent=1 // pred_check_branch
      %23 = sbr.rel (0) target = $region9
    $region8: #{tpu_custom_call.1} parent=1 // pred_region
      %s25 = ssub.s32 256, 256
      %26 = vsyncadd [#allocation7], %s25
      %s27 = sshll.u32 [#allocation6], 4
      %s28 = int_to_ptr.vmem [resolvable:$true] %s27
      %33 = dma.hbm_to_vmem [thread:$0]  %s1, 256, %s28, [#allocation7], 64, 64, 4
    $region9: #{tpu_custom_call.1} parent=1 // pred_fallthru
      _
    // Predicated region
    $region10: #{tpu_custom_call.1} parent=1 // pred_check
      _
    $region11: #{tpu_custom_call.1} parent=1 // pred_check_branch
      %35 = sbr.rel (0) target = $region13
    $region12: #{tpu_custom_call.1} parent=1 // pred_region
      _
    $region13: #{tpu_custom_call.1} parent=1 // pred_fallthru
      _
    // Predicated region
    $region14: #{tpu_custom_call.1} parent=1 // pred_check
      _
    $region15: #{tpu_custom_call.1} parent=1 // pred_check_branch
      %37 = sbr.rel (0) target = $region17
    $region16: #{tpu_custom_call.1} parent=1 // pred_region
      _
    $region17: #{tpu_custom_call.1} parent=1 // pred_fallthru
      _
    // Predicated region
    $region18: #{tpu_custom_call.1} parent=1 // pred_check
      _
    $region19: #{tpu_custom_call.1} parent=1 // pred_check_branch
      %39 = sbr.rel (0) target = $region21
    $region20: #{tpu_custom_call.1} parent=1 // pred_region
      %40 = dma.done [#allocation4], 128
    $region21: #{tpu_custom_call.1} parent=1 // pred_fallthru
      _
    // Predicated region
    $region22: #{tpu_custom_call.1} parent=1 // pred_check
      _
    $region23: #{tpu_custom_call.1} parent=1 // pred_check_branch
      %42 = sbr.rel (0) target = $region25
    $region24: #{tpu_custom_call.1} parent=1 // pred_region
      %43 = dma.done [#allocation7], 256
    $region25: #{tpu_custom_call.1} parent=1 // pred_fallthru
      _
    %v45 = vld [vmem:[#allocation3] sm:$0xff]
    %v46 = vpack.c.bf16 %v45, %v45
    %v47 = vld [vmem:[#allocation6] sm:$0xf]
    %v48 = vld [vmem:[#allocation6 + $0x4] sm:$0xf]
    %v49 = vld [vmem:[#allocation6 + $0x8] sm:$0xf]
    %v50 = vld [vmem:[#allocation6 + $0xc] sm:$0xf]
    %v55 = vunpack.c.l.b16 %v47
    %v56 = vunpack.c.l.b16 %v48
    %v57 = vunpack.c.l.b16 %v49
    %v58 = vunpack.c.l.b16 %v50
    %v59 = vpack.c.b16 %v56, %v55
    %v60 = vpack.c.b16 %v58, %v57
    %vm63 = vcmask 261120
    %v65 = vsel %vm63, %v46, 0
    %67 = vmatprep.subr.bf16.mxu0 0
    %68 = vmatpush1.bf16.msra.mxu0 0
    %69 = vmatprep.subr.bf16.mxu0 0
    %70 = vmatpush1.bf16.msra.mxu0 0
    %71 = vmatprep.subr.bf16.mxu0 0
    %72 = vmatpush1.bf16.msra.mxu0 0
    %73 = vmatprep.subr.bf16.mxu0 0
    %74 = vmatpush1.bf16.msra.mxu0 0
    %75 = vmatprep.subr.bf16.mxu0 0
    %76 = vmatpush1.bf16.msra.mxu0 0
    %77 = vmatprep.subr.bf16.mxu0 0
    %78 = vmatpush1.bf16.msra.mxu0 0
    %79 = vmatprep.subr.bf16.mxu0 0
    %80 = vmatpush1.bf16.msra.mxu0 %v60
    %81 = vmatprep.subr.bf16.mxu0 0
    %82 = vmatpush1.bf16.msra.mxu0 %v59
    %83 = vmatprep.subr.bf16.mxu0 0
    %84 = vmatpush2.bf16.msra.mxu0 0
    %85 = vmatprep.subr.bf16.mxu0 0
    %86 = vmatpush2.bf16.msra.mxu0 0
    %87 = vmatprep.subr.bf16.mxu0 0
    %88 = vmatpush2.bf16.msra.mxu0 0
    %89 = vmatprep.subr.bf16.mxu0 0
    %90 = vmatpush2.bf16.msra.mxu0 0
    %91 = vmatprep.subr.bf16.mxu0 0
    %92 = vmatpush2.bf16.msra.mxu0 0
    %93 = vmatprep.subr.bf16.mxu0 0
    %94 = vmatpush2.bf16.msra.mxu0 0
    %95 = vmatprep.subr.bf16.mxu0 0
    %96 = vmatpush2.bf16.msra.mxu0 0
    %97 = vmatprep.subr.bf16.mxu0 0
    %98 = vmatpush2.bf16.msra.mxu0 0
    %99 = vmatprep.mubr.bf16.mxu0 0
    %100 = vmatmul.mubr.bf16.gmra.mxu0 %v65
    %v101 = vpop.f32.mrf.mxu0
    %v102 = vadd.f32 0.0, %v101
    %v103 = vpop.f32.mrf.mxu0
    %v104 = vpop.f32.mrf.mxu0
    %v105 = vpop.f32.mrf.mxu0
    %106 = vdwg.mxu0
    %p107 = scmp.eq.s32.totalorder 0, 0
    // Predicated region
    $region26: #{tpu_custom_call.1} parent=1 // pred_check
      %p108 = pneg %p107
    $region27: #{tpu_custom_call.1} parent=1 // pred_check_branch
      %110 = sbr.rel (%p108) target = $region29
    $region28: #{tpu_custom_call.1} parent=1 // pred_region
      %111 = vst.msk [vmem:[#allocation2] sm:$0xff] %vm63, %v102
    $region29: #{tpu_custom_call.1} parent=1 // pred_fallthru
      _
    %p112 = scmp.gt.s32.totalorder 0, 0
    // Predicated region
    $region30: #{tpu_custom_call.1} parent=1 // pred_check
      %p113 = pneg %p112
    $region31: #{tpu_custom_call.1} parent=1 // pred_check_branch
      %115 = sbr.rel (%p113) target = $region33
    $region32: #{tpu_custom_call.1} parent=1 // pred_region
      %v116 = vld [vmem:[#allocation2] sm:$0xff]
      %v117 = vadd.f32 %v116, %v102
      %118 = vst.msk [vmem:[#allocation2] sm:$0xff] %vm63, %v117
    $region33: #{tpu_custom_call.1} parent=1 // pred_fallthru
      _
    // Predicated region
    $region34: #{tpu_custom_call.1} parent=1 // pred_check
      %p119 = pneg %p107
    $region35: #{tpu_custom_call.1} parent=1 // pred_check_branch
      %121 = sbr.rel (%p119) target = $region37
    $region36: #{tpu_custom_call.1} parent=1 // pred_region
      %v122 = vld [vmem:[#allocation2] sm:$0xff]
      %v123 = vsel %vm63, %v122, 0.0
      %v124 = vrot.slane %v123, 4
      %v125 = vadd.f32 %v123, %v124
      %v126 = vrot.slane %v125, 2
      %v127 = vadd.f32 %v125, %v126
      %v128 = vrot.slane %v127, 1
      %v129 = vadd.f32 %v127, %v128
      %v130 = vmul.f32 %v122, %v122
      %v131 = vsel %vm63, %v130, 0.0
      %v132 = vrot.slane %v131, 4
      %v133 = vadd.f32 %v131, %v132
      %v134 = vrot.slane %v133, 2
      %v135 = vadd.f32 %v133, %v134
      %v136 = vrot.slane %v135, 1
      %v137 = vadd.f32 %v135, %v136
      %v138 = vmul.f32 %v129, 0.125
      %v139 = vmul.f32 %v137, 0.125
      %v140 = vmul.f32 %v138, %v138
      %v141 = vsub.f32 %v139, %v140
      %v142 = vmax.f32 %v141, 0.0
      %v143 = vadd.f32 %v142, 1e-05
      %v144 = vrsqrt.pop %v143
      %v145 = vld [vmem:[%s2] sm:$0x1]
      %v146 = vmul.f32 %v145, %v144
      %v147 = vld [vmem:[%s3] sm:$0x1]
      %v148 = vmul.f32 %v138, %v146
      %v149 = vsub.f32 %v147, %v148
      %v151 = vlaneseq
      %v152 = vshrl.u32 %v151, 7
      %v153 = vsub.s32 0, %v152
      %v154 = vrot.slane %v146, %v153
      %v156 = vmul.f32 %v122, %v154
      %v158 = vlaneseq
      %v159 = vshrl.u32 %v158, 7
      %v160 = vsub.s32 0, %v159
      %v161 = vrot.slane %v149, %v160
      %v163 = vadd.f32 %v156, %v161
      %164 = vst.msk [vmem:[#allocation8] sm:$0xff] %vm63, %v163
    $region37: #{tpu_custom_call.1} parent=1 // pred_fallthru
      _
    // Predicated region
    $region38: #{tpu_custom_call.1} parent=1 // pred_check
      _
    $region39: #{tpu_custom_call.1} parent=1 // pred_check_branch
      %166 = sbr.rel (0) target = $region41
    $region40: #{tpu_custom_call.1} parent=1 // pred_region
      %s168 = ssub.s32 128, 128
      %169 = vsyncadd [#allocation5], %s168
      %s171 = sshll.u32 [#allocation8], 4
      %s172 = int_to_ptr.vmem [resolvable:$true] %s171
      %174 = dma.vmem_to_hbm [thread:$0]  %s172, 128, %s4, [#allocation5]
    $region41: #{tpu_custom_call.1} parent=1 // pred_fallthru
      _
    // Predicated region
    $region42: #{tpu_custom_call.1} parent=1 // pred_check
      _
    $region43: #{tpu_custom_call.1} parent=1 // pred_check_branch
      %176 = sbr.rel (0) target = $region45
    $region44: #{tpu_custom_call.1} parent=1 // pred_region
      %177 = dma.done [#allocation5], 128
    $region45: #{tpu_custom_call.1} parent=1 // pred_fallthru
      _
    %178 = vsyncpa [#allocation4], 1
    %179 = vsyncpa [#allocation7], 1
    %180 = vsyncpa [#allocation5], 1

</llo_original>
